<compile_context>
chip_gen: v7x
topology: tpu7x:2x2x1
jax: 0.10.0
libtpu: 0.0.40
codegen_flags: <defaults>
</compile_context>

<pallas_src>
import functools

import jax
import jax.numpy as jnp
from jax.experimental import pallas as pl
from jax.experimental.pallas import tpu as pltpu

_EPS = 1e-5


def _round_up(a, b):
    return (a + b - 1) // b * b


def _fold_bn(w, b, gamma, beta, rmean, rvar, eps=_EPS):
    """Fold eval-mode BatchNorm1d into the preceding Linear."""
    scale = gamma * jax.lax.rsqrt(rvar + eps)             # (out,)
    w_f = (w * scale[None, :]).astype(jnp.float32)        # (in, out)
    b_f = ((b - rmean) * scale + beta)[None, :]           # (1, out)
    return w_f, b_f.astype(jnp.float32)


def _block_diag(w, g):
    """(k, n) -> (g*k, g*n) block-diagonal with g copies of w."""
    k, n = w.shape
    eye = jnp.eye(g, dtype=w.dtype)
    return jnp.einsum("ij,kn->ikjn", eye, w).reshape(g * k, g * n)


def _disc_kernel(x_ref, w1_ref, b1_ref, w2_ref, b2_ref, w3_ref, b3_ref,
                 w4_ref, b4_ref, o_ref):
    """One packed batch tile: 4 Linear(+folded BN)+ReLU layers + Sigmoid.

    Operands are lane-packed (G original rows per vector row) so every matmul
    feeds the MXU with 64-128 useful lanes; bf16 operands, f32 accumulation.
    """
    h = x_ref[...].astype(jnp.bfloat16)                                  # (TM, 2G)
    z = jnp.dot(h, w1_ref[...], preferred_element_type=jnp.float32) + b1_ref[...]
    h = jnp.maximum(z, 0.0).astype(jnp.bfloat16)                         # (TM, G*H1)
    z = jnp.dot(h, w2_ref[...], preferred_element_type=jnp.float32) + b2_ref[...]
    h = jnp.maximum(z, 0.0).astype(jnp.bfloat16)                         # (TM, G*H2)
    z = jnp.dot(h, w3_ref[...], preferred_element_type=jnp.float32) + b3_ref[...]
    h = jnp.maximum(z, 0.0).astype(jnp.bfloat16)                         # (TM, G*H3)
    logits = jnp.dot(h, w4_ref[...], preferred_element_type=jnp.float32) + b4_ref[...]
    # Sigmoid via EUP exp + approximate EUP reciprocal.
    o_ref[...] = pl.reciprocal(1.0 + jnp.exp(-logits), approx=True)      # (TM, G)


@functools.partial(jax.jit, static_argnames=("block_rows",))
def discriminator_forward(x, params, block_rows=8192):
    p = params
    # Fold eval-mode BN into the Linears (once, in the wrapper).
    w1f, b1f = _fold_bn(p["w1"], p["b1"], p["g1"], p["beta1"], p["rm1"], p["rv1"])
    w2f, b2f = _fold_bn(p["w2"], p["b2"], p["g2"], p["beta2"], p["rm2"], p["rv2"])
    w3f, b3f = _fold_bn(p["w3"], p["b3"], p["g3"], p["beta3"], p["rm3"], p["rv3"])
    w4 = p["w4"].astype(jnp.float32)                       # (H3, 1)
    b4 = p["b4"].reshape(1, 1).astype(jnp.float32)         # (1, 1)

    h1, h2, h3 = w1f.shape[1], w2f.shape[1], w3f.shape[1]
    # Lane-packing factor: G rows per vector row; G*max(H) fills the 128 lanes
    # (exactly fills v5e's 128-wide MXU; still a big win on v6e/v7x's 256-wide MXU).
    g = max(1, min(8, 128 // max(h1, h2, h3, 2)))

    # Block-diagonal packed weights (tiny arrays, built per call inside the jit);
    # bf16 copies feed the MXU, biases stay f32.
    w1b = _block_diag(w1f, g).astype(jnp.bfloat16)         # (2G,   G*H1)
    w2b = _block_diag(w2f, g).astype(jnp.bfloat16)         # (G*H1, G*H2)
    w3b = _block_diag(w3f, g).astype(jnp.bfloat16)         # (G*H2, G*H3)
    w4b = _block_diag(w4, g).astype(jnp.bfloat16)          # (G*H3, G)
    b1t = jnp.tile(b1f, (1, g))
    b2t = jnp.tile(b2f, (1, g))
    b3t = jnp.tile(b3f, (1, g))
    b4t = jnp.tile(b4, (1, g))

    x = x.astype(jnp.float32)
    n, f = x.shape
    n_g = _round_up(n, g)
    if n_g != n:                      # only a <=G-1-row pad; usually a no-op
        x = jnp.pad(x, ((0, n_g - n), (0, 0)))
    xp = x.reshape(n_g // g, g * f)   # free row-major reshape: G consecutive rows/lane row
    rows = xp.shape[0]

    # Packed-row tile size: multiple of 8 sublanes; cap at cdiv(rows, 2) so v7x's
    # two TensorCores both get work whenever there is more than one tile of data.
    if rows <= 8:
        tm = rows                                           # single full-dim block
    else:
        tm = min(max(block_rows // g, 8), pl.cdiv(rows, 2))
        tm = _round_up(tm, 8)

    def const_spec(a):
        # Full-array block, same block every step -> stays VMEM-resident.
        return pl.BlockSpec(a.shape, lambda i: (0, 0))

    out = pl.pallas_call(
        _disc_kernel,
        out_shape=jax.ShapeDtypeStruct((rows, g), jnp.float32),
        grid=(pl.cdiv(rows, tm),),     # ragged last block OK: row-local math,
        in_specs=[                     # garbage tail rows' writes are dropped.
            pl.BlockSpec((tm, g * f), lambda i: (i, 0)),    # packed batch tile of x
            const_spec(w1b), const_spec(b1t),
            const_spec(w2b), const_spec(b2t),
            const_spec(w3b), const_spec(b3t),
            const_spec(w4b), const_spec(b4t),
        ],
        out_specs=pl.BlockSpec((tm, g), lambda i: (i, 0)),
        compiler_params=pltpu.CompilerParams(
            dimension_semantics=("parallel",)),
    )(xp, w1b, b1t, w2b, b2t, w3b, b3t, w4b, b4t)
    return out.reshape(rows * g, 1)[:n]


def init_params(key, h1, h2, h3):
    """Linear init matches PyTorch (U(-1/sqrt(fan_in), +1/sqrt(fan_in))).
    BN params / running stats are randomized away from fresh-module defaults
    (gamma=1, beta=0, mean=0, var=1) so the BN fold is actually exercised."""
    dims = [(2, h1), (h1, h2), (h2, h3), (h3, 1)]
    keys = jax.random.split(key, 6 * len(dims))
    p = {}
    for i, (fi, fo) in enumerate(dims):
        kw, kb, kg, kbe, km, kv = keys[6 * i:6 * i + 6]
        bound = 1.0 / float(fi) ** 0.5
        p[f"w{i+1}"] = jax.random.uniform(kw, (fi, fo), minval=-bound,
                                          maxval=bound, dtype=jnp.float32)
        p[f"b{i+1}"] = jax.random.uniform(kb, (fo,), minval=-bound,
                                          maxval=bound, dtype=jnp.float32)
        if i < 3:
            p[f"g{i+1}"] = jax.random.uniform(kg, (fo,), jnp.float32, 0.5, 1.5)
            p[f"beta{i+1}"] = jax.random.uniform(kbe, (fo,), jnp.float32, -0.5, 0.5)
            p[f"rm{i+1}"] = jax.random.uniform(km, (fo,), jnp.float32, -0.5, 0.5)
            p[f"rv{i+1}"] = jax.random.uniform(kv, (fo,), jnp.float32, 0.5, 1.5)
    return p


def reference_forward(x, p, eps=_EPS):
    """Module-faithful eval-mode forward, full f32 (HIGHEST matmul precision)."""
    hp = jax.lax.Precision.HIGHEST

    def blk(h, w, b, g, be, rm, rv):
        z = jnp.dot(h, w, precision=hp) + b
        z = g * (z - rm) / jnp.sqrt(rv + eps) + be
        return jnp.maximum(z, 0.0)            # ReLU; Dropout = identity (eval)

    h = blk(x, p["w1"], p["b1"], p["g1"], p["beta1"], p["rm1"], p["rv1"])
    h = blk(h, p["w2"], p["b2"], p["g2"], p["beta2"], p["rm2"], p["rv2"])
    h = blk(h, p["w3"], p["b3"], p["g3"], p["beta3"], p["rm3"], p["rv3"])
    return jax.nn.sigmoid(jnp.dot(h, p["w4"], precision=hp) + p["b4"])


def reference_forward_matched(x, p):
    """Same math as the kernel (folded BN, bf16 MXU operands, f32 accum) in plain JAX."""
    w1f, b1f = _fold_bn(p["w1"], p["b1"], p["g1"], p["beta1"], p["rm1"], p["rv1"])
    w2f, b2f = _fold_bn(p["w2"], p["b2"], p["g2"], p["beta2"], p["rm2"], p["rv2"])
    w3f, b3f = _fold_bn(p["w3"], p["b3"], p["g3"], p["beta3"], p["rm3"], p["rv3"])

    def lin(h, w, b):
        return jnp.dot(h.astype(jnp.bfloat16), w.astype(jnp.bfloat16),
                       preferred_element_type=jnp.float32) + b

    h = jnp.maximum(lin(x, w1f, b1f), 0.0)
    h = jnp.maximum(lin(h, w2f, b2f), 0.0)
    h = jnp.maximum(lin(h, w3f, b3f), 0.0)
    logits = lin(h, p["w4"].astype(jnp.float32), p["b4"].reshape(1, 1))
    return jax.nn.sigmoid(logits)


if __name__ == "__main__":
    H1, H2, H3 = 32, 32, 16   # dropout p only matters in train mode
    key = jax.random.PRNGKey(0)
    k_x, k_x2, k_x3, k_p = jax.random.split(key, 4)
    params = init_params(k_p, H1, H2, H3)

    tests = []

    # Small test (single grid step, full-dim block).
    x_small = jax.random.normal(k_x, (8, 2), dtype=jnp.float32)
    out_small = discriminator_forward(x_small, params)
    jax.block_until_ready(out_small)
    assert out_small.shape == (8, 1), out_small.shape
    tests.append((x_small, out_small))

    # Multi-tile test (2 batch tiles -> exercises the pipeline / megacore split).
    x_big = jax.random.normal(k_x2, (2048, 2), dtype=jnp.float32)
    out_big = discriminator_forward(x_big, params, block_rows=1024)
    jax.block_until_ready(out_big)
    assert out_big.shape == (2048, 1), out_big.shape
    tests.append((x_big, out_big))

    # Ragged test: N not a multiple of G or the tile -> G-pad + ragged last block.
    x_rag = jax.random.normal(k_x3, (1003, 2), dtype=jnp.float32)
    out_rag = discriminator_forward(x_rag, params)
    jax.block_until_ready(out_rag)
    assert out_rag.shape == (1003, 1), out_rag.shape
    tests.append((x_rag, out_rag))

    for x_t, out_t in tests:
        ref_tight = reference_forward_matched(x_t, params)
        ref_f32 = reference_forward(x_t, params)
        err_tight = float(jnp.max(jnp.abs(out_t - ref_tight)))
        err_f32 = float(jnp.max(jnp.abs(out_t - ref_f32)))
        # Tight check vs a precision-matched reference (bf16 MXU + approx rcp).
        assert err_tight < 5e-3, f"precision-matched mismatch: {err_tight}"
        # Looser sanity check vs the full-f32 module-semantics reference; bound
        # accounts for bf16 MXU operands on all four layers.
        assert err_f32 < 2.5e-2, f"module (f32) mismatch: {err_f32}"

    print("KERNEL_OK")
</pallas_src>

<mosaic_0001>
module attributes {stable_mosaic.version = 11 : i64} {
  func.func @_disc_kernel(%arg0: i32, %arg1: memref<2x8xf32, #tpu.memory_space<vmem>>, %arg2: memref<8x128xbf16, #tpu.memory_space<vmem>>, %arg3: memref<1x128xf32, #tpu.memory_space<vmem>>, %arg4: memref<128x128xbf16, #tpu.memory_space<vmem>>, %arg5: memref<1x128xf32, #tpu.memory_space<vmem>>, %arg6: memref<128x64xbf16, #tpu.memory_space<vmem>>, %arg7: memref<1x64xf32, #tpu.memory_space<vmem>>, %arg8: memref<64x4xbf16, #tpu.memory_space<vmem>>, %arg9: memref<1x4xf32, #tpu.memory_space<vmem>>, %arg10: memref<2x4xf32, #tpu.memory_space<vmem>>) attributes {dimension_semantics = [#tpu.dimension_semantics<parallel>], iteration_bounds = array<i64: 1>, scalar_prefetch = 0 : i64, scratch_operands = 0 : i64, tpu.core_type = #tpu.core_type<tc>, window_params = [{transform_indices = @transform_0, window_bounds = array<i64: 2, 8>}, {pipeline_mode = #tpu.pipeline_mode<synchronous>, transform_indices = @transform_1, window_bounds = array<i64: 8, 128>}, {pipeline_mode = #tpu.pipeline_mode<synchronous>, transform_indices = @transform_2, window_bounds = array<i64: 1, 128>}, {pipeline_mode = #tpu.pipeline_mode<synchronous>, transform_indices = @transform_3, window_bounds = array<i64: 128, 128>}, {pipeline_mode = #tpu.pipeline_mode<synchronous>, transform_indices = @transform_4, window_bounds = array<i64: 1, 128>}, {pipeline_mode = #tpu.pipeline_mode<synchronous>, transform_indices = @transform_5, window_bounds = array<i64: 128, 64>}, {pipeline_mode = #tpu.pipeline_mode<synchronous>, transform_indices = @transform_6, window_bounds = array<i64: 1, 64>}, {pipeline_mode = #tpu.pipeline_mode<synchronous>, transform_indices = @transform_7, window_bounds = array<i64: 64, 4>}, {pipeline_mode = #tpu.pipeline_mode<synchronous>, transform_indices = @transform_8, window_bounds = array<i64: 1, 4>}, {transform_indices = @transform_9, window_bounds = array<i64: 2, 4>}]} {
    %c0 = arith.constant 0 : index
    %c0_0 = arith.constant 0 : index
    %0 = vector.load %arg1[%c0, %c0_0] : memref<2x8xf32, #tpu.memory_space<vmem>>, vector<2x8xf32>
    %1 = arith.truncf %0 : vector<2x8xf32> to vector<2x8xbf16>
    %c0_1 = arith.constant 0 : index
    %c0_2 = arith.constant 0 : index
    %2 = vector.load %arg2[%c0_1, %c0_2] : memref<8x128xbf16, #tpu.memory_space<vmem>>, vector<8x128xbf16>
    %cst = arith.constant dense<0.000000e+00> : vector<2x128xf32>
    %3 = tpu.matmul %1, %2, %cst {dimension_numbers = #tpu.dot_dimension_numbers<[1], [0], [0], [1], [0, 0, 1, 1], [], []>} : vector<2x8xbf16>, vector<8x128xbf16>, vector<2x128xf32> -> vector<2x128xf32>
    %c0_3 = arith.constant 0 : index
    %c0_4 = arith.constant 0 : index
    %4 = vector.load %arg3[%c0_3, %c0_4] : memref<1x128xf32, #tpu.memory_space<vmem>>, vector<1x128xf32>
    %5 = vector.broadcast %4 : vector<1x128xf32> to vector<2x128xf32>
    %6 = arith.addf %3, %5 : vector<2x128xf32>
    %cst_5 = arith.constant 0.000000e+00 : f32
    %7 = vector.broadcast %cst_5 : f32 to vector<2x128xf32>
    %8 = arith.maximumf %6, %7 : vector<2x128xf32>
    %9 = arith.truncf %8 : vector<2x128xf32> to vector<2x128xbf16>
    %c0_6 = arith.constant 0 : index
    %c0_7 = arith.constant 0 : index
    %10 = vector.load %arg4[%c0_6, %c0_7] : memref<128x128xbf16, #tpu.memory_space<vmem>>, vector<128x128xbf16>
    %cst_8 = arith.constant dense<0.000000e+00> : vector<2x128xf32>
    %11 = tpu.matmul %9, %10, %cst_8 {dimension_numbers = #tpu.dot_dimension_numbers<[1], [0], [0], [1], [0, 0, 1, 1], [], []>} : vector<2x128xbf16>, vector<128x128xbf16>, vector<2x128xf32> -> vector<2x128xf32>
    %c0_9 = arith.constant 0 : index
    %c0_10 = arith.constant 0 : index
    %12 = vector.load %arg5[%c0_9, %c0_10] : memref<1x128xf32, #tpu.memory_space<vmem>>, vector<1x128xf32>
    %13 = vector.broadcast %12 : vector<1x128xf32> to vector<2x128xf32>
    %14 = arith.addf %11, %13 : vector<2x128xf32>
    %cst_11 = arith.constant 0.000000e+00 : f32
    %15 = vector.broadcast %cst_11 : f32 to vector<2x128xf32>
    %16 = arith.maximumf %14, %15 : vector<2x128xf32>
    %17 = arith.truncf %16 : vector<2x128xf32> to vector<2x128xbf16>
    %c0_12 = arith.constant 0 : index
    %c0_13 = arith.constant 0 : index
    %18 = vector.load %arg6[%c0_12, %c0_13] : memref<128x64xbf16, #tpu.memory_space<vmem>>, vector<128x64xbf16>
    %cst_14 = arith.constant dense<0.000000e+00> : vector<2x64xf32>
    %19 = tpu.matmul %17, %18, %cst_14 {dimension_numbers = #tpu.dot_dimension_numbers<[1], [0], [0], [1], [0, 0, 1, 1], [], []>} : vector<2x128xbf16>, vector<128x64xbf16>, vector<2x64xf32> -> vector<2x64xf32>
    %c0_15 = arith.constant 0 : index
    %c0_16 = arith.constant 0 : index
    %20 = vector.load %arg7[%c0_15, %c0_16] : memref<1x64xf32, #tpu.memory_space<vmem>>, vector<1x64xf32>
    %21 = vector.broadcast %20 : vector<1x64xf32> to vector<2x64xf32>
    %22 = arith.addf %19, %21 : vector<2x64xf32>
    %cst_17 = arith.constant 0.000000e+00 : f32
    %23 = vector.broadcast %cst_17 : f32 to vector<2x64xf32>
    %24 = arith.maximumf %22, %23 : vector<2x64xf32>
    %25 = arith.truncf %24 : vector<2x64xf32> to vector<2x64xbf16>
    %c0_18 = arith.constant 0 : index
    %c0_19 = arith.constant 0 : index
    %26 = vector.load %arg8[%c0_18, %c0_19] : memref<64x4xbf16, #tpu.memory_space<vmem>>, vector<64x4xbf16>
    %cst_20 = arith.constant dense<0.000000e+00> : vector<2x4xf32>
    %27 = tpu.matmul %25, %26, %cst_20 {dimension_numbers = #tpu.dot_dimension_numbers<[1], [0], [0], [1], [0, 0, 1, 1], [], []>} : vector<2x64xbf16>, vector<64x4xbf16>, vector<2x4xf32> -> vector<2x4xf32>
    %c0_21 = arith.constant 0 : index
    %c0_22 = arith.constant 0 : index
    %28 = vector.load %arg9[%c0_21, %c0_22] : memref<1x4xf32, #tpu.memory_space<vmem>>, vector<1x4xf32>
    %29 = vector.broadcast %28 : vector<1x4xf32> to vector<2x4xf32>
    %30 = arith.addf %27, %29 : vector<2x4xf32>
    %cst_23 = arith.constant 0.000000e+00 : f32
    %31 = vector.broadcast %cst_23 : f32 to vector<2x4xf32>
    %32 = arith.subf %31, %30 : vector<2x4xf32>
    %33 = math.exp %32 : vector<2x4xf32>
    %cst_24 = arith.constant 1.000000e+00 : f32
    %34 = vector.broadcast %cst_24 : f32 to vector<2x4xf32>
    %35 = arith.addf %34, %33 : vector<2x4xf32>
    %36 = tpu.reciprocal %35 {approx = true} : vector<2x4xf32> -> vector<2x4xf32>
    %c0_25 = arith.constant 0 : index
    %c0_26 = arith.constant 0 : index
    %37 = vector.load %arg10[%c0_25, %c0_26] : memref<2x4xf32, #tpu.memory_space<vmem>>, vector<2x4xf32>
    tpu.vector_store %arg10[%c0_25, %c0_26], %36 {strides = array<i32>} : memref<2x4xf32, #tpu.memory_space<vmem>>, vector<2x4xf32>,
    return
  }
  func.func @transform_0(%arg0: i32) -> (i32, i32) {
    %c0_i32 = arith.constant 0 : i32
    %c0_i32_0 = arith.constant 0 : i32
    return %arg0, %c0_i32 : i32, i32
  }
  func.func @transform_1(%arg0: i32) -> (i32, i32) {
    %c0_i32 = arith.constant 0 : i32
    %c0_i32_0 = arith.constant 0 : i32
    %c0_i32_1 = arith.constant 0 : i32
    return %c0_i32, %c0_i32_0 : i32, i32
  }
  func.func @transform_2(%arg0: i32) -> (i32, i32) {
    %c0_i32 = arith.constant 0 : i32
    %c0_i32_0 = arith.constant 0 : i32
    %c0_i32_1 = arith.constant 0 : i32
    return %c0_i32, %c0_i32_0 : i32, i32
  }
  func.func @transform_3(%arg0: i32) -> (i32, i32) {
    %c0_i32 = arith.constant 0 : i32
    %c0_i32_0 = arith.constant 0 : i32
    %c0_i32_1 = arith.constant 0 : i32
    return %c0_i32, %c0_i32_0 : i32, i32
  }
  func.func @transform_4(%arg0: i32) -> (i32, i32) {
    %c0_i32 = arith.constant 0 : i32
    %c0_i32_0 = arith.constant 0 : i32
    %c0_i32_1 = arith.constant 0 : i32
    return %c0_i32, %c0_i32_0 : i32, i32
  }
  func.func @transform_5(%arg0: i32) -> (i32, i32) {
    %c0_i32 = arith.constant 0 : i32
    %c0_i32_0 = arith.constant 0 : i32
    %c0_i32_1 = arith.constant 0 : i32
    return %c0_i32, %c0_i32_0 : i32, i32
  }
  func.func @transform_6(%arg0: i32) -> (i32, i32) {
    %c0_i32 = arith.constant 0 : i32
    %c0_i32_0 = arith.constant 0 : i32
    %c0_i32_1 = arith.constant 0 : i32
    return %c0_i32, %c0_i32_0 : i32, i32
  }
  func.func @transform_7(%arg0: i32) -> (i32, i32) {
    %c0_i32 = arith.constant 0 : i32
    %c0_i32_0 = arith.constant 0 : i32
    %c0_i32_1 = arith.constant 0 : i32
    return %c0_i32, %c0_i32_0 : i32, i32
  }
  func.func @transform_8(%arg0: i32) -> (i32, i32) {
    %c0_i32 = arith.constant 0 : i32
    %c0_i32_0 = arith.constant 0 : i32
    %c0_i32_1 = arith.constant 0 : i32
    return %c0_i32, %c0_i32_0 : i32, i32
  }
  func.func @transform_9(%arg0: i32) -> (i32, i32) {
    %c0_i32 = arith.constant 0 : i32
    %c0_i32_0 = arith.constant 0 : i32
    return %arg0, %c0_i32 : i32, i32
  }
}

</mosaic_0001>

<llo_original>
// kernel: discriminator_forward.1
$region0: #{discriminator_forward.1}
  #allocation0 [shape = 'u32[]', space=smem, size = 0x4, offset = 0x4, fixed_abs, tag = 'smem constant byte address 0x4 - core index']
  #allocation1 [shape = 'u32[144,128]{1,0:T(1,128)}', space=vmem, size = 0x12000, scoped, tag = 'internal scratch']
  %s0 = inlined_call_operand.vmem [shape: f32[2,8], index: 0, kind: input, shape index: {}]
  %s1 = inlined_call_operand.vmem [shape: bf16[8,128], index: 1, kind: input, shape index: {}]
  %s2 = inlined_call_operand.vmem [shape: f32[1,128], index: 2, kind: input, shape index: {}]
  %s3 = inlined_call_operand.vmem [shape: bf16[128,128], index: 3, kind: input, shape index: {}]
  %s4 = inlined_call_operand.vmem [shape: f32[1,128], index: 4, kind: input, shape index: {}]
  %s5 = inlined_call_operand.vmem [shape: bf16[128,64], index: 5, kind: input, shape index: {}]
  %s6 = inlined_call_operand.vmem [shape: f32[1,64], index: 6, kind: input, shape index: {}]
  %s7 = inlined_call_operand.vmem [shape: bf16[64,4], index: 7, kind: input, shape index: {}]
  %s8 = inlined_call_operand.vmem [shape: f32[1,4], index: 8, kind: input, shape index: {}]
  %s9 = inlined_call_operand.vmem [shape: f32[2,4], index: 9, kind: output, shape index: {}]
  %s10 = sld [smem:[#allocation0]]
  $region46: #{discriminator_forward.1} parent=0
    _
  %s12 = ssub.s32 1, %s10
  %s13 = scalar_select 0, %s12, %s10
  // Predicated region
  $region2: #{discriminator_forward.1} parent=0 // pred_check
    _
  $region3: #{discriminator_forward.1} parent=0 // pred_check_branch
    %15 = sbr.rel (0) target = $region5
  $region4: #{discriminator_forward.1} parent=0 // pred_region
    _
  $region5: #{discriminator_forward.1} parent=0 // pred_fallthru
    _
  // Predicated region
  $region6: #{discriminator_forward.1} parent=0 // pred_check
    _
  $region7: #{discriminator_forward.1} parent=0 // pred_check_branch
    %17 = sbr.rel (0) target = $region9
  $region8: #{discriminator_forward.1} parent=0 // pred_region
    _
  $region9: #{discriminator_forward.1} parent=0 // pred_fallthru
    _
  // Predicated region
  $region10: #{discriminator_forward.1} parent=0 // pred_check
    _
  $region11: #{discriminator_forward.1} parent=0 // pred_check_branch
    %19 = sbr.rel (0) target = $region13
  $region12: #{discriminator_forward.1} parent=0 // pred_region
    _
  $region13: #{discriminator_forward.1} parent=0 // pred_fallthru
    _
  // Predicated region
  $region14: #{discriminator_forward.1} parent=0 // pred_check
    _
  $region15: #{discriminator_forward.1} parent=0 // pred_check_branch
    %21 = sbr.rel (0) target = $region17
  $region16: #{discriminator_forward.1} parent=0 // pred_region
    _
  $region17: #{discriminator_forward.1} parent=0 // pred_fallthru
    _
  // Predicated region
  $region18: #{discriminator_forward.1} parent=0 // pred_check
    _
  $region19: #{discriminator_forward.1} parent=0 // pred_check_branch
    %23 = sbr.rel (0) target = $region21
  $region20: #{discriminator_forward.1} parent=0 // pred_region
    _
  $region21: #{discriminator_forward.1} parent=0 // pred_fallthru
    _
  // Predicated region
  $region22: #{discriminator_forward.1} parent=0 // pred_check
    _
  $region23: #{discriminator_forward.1} parent=0 // pred_check_branch
    %25 = sbr.rel (0) target = $region25
  $region24: #{discriminator_forward.1} parent=0 // pred_region
    _
  $region25: #{discriminator_forward.1} parent=0 // pred_fallthru
    _
  // Predicated region
  $region26: #{discriminator_forward.1} parent=0 // pred_check
    _
  $region27: #{discriminator_forward.1} parent=0 // pred_check_branch
    %27 = sbr.rel (0) target = $region29
  $region28: #{discriminator_forward.1} parent=0 // pred_region
    _
  $region29: #{discriminator_forward.1} parent=0 // pred_fallthru
    _
  // Predicated region
  $region30: #{discriminator_forward.1} parent=0 // pred_check
    _
  $region31: #{discriminator_forward.1} parent=0 // pred_check_branch
    %29 = sbr.rel (0) target = $region33
  $region32: #{discriminator_forward.1} parent=0 // pred_region
    _
  $region33: #{discriminator_forward.1} parent=0 // pred_fallthru
    _
  // Predicated region
  $region34: #{discriminator_forward.1} parent=0 // pred_check
    _
  $region35: #{discriminator_forward.1} parent=0 // pred_check_branch
    %31 = sbr.rel (0) target = $region37
  $region36: #{discriminator_forward.1} parent=0 // pred_region
    _
  $region37: #{discriminator_forward.1} parent=0 // pred_fallthru
    _
  %v33 = vld [vmem:[%s0] sm:$0x3]
  %v34 = vpack.c.bf16 %v33, %v33
  %v35 = vld [vmem:[%s1] sm:$0xf]
  %v36 = vld [vmem:[%s2] sm:$0x1]
  %v38 = vlaneseq
  %v39 = vshrl.u32 %v38, 7
  %v40 = vsub.s32 0, %v39
  %v41 = vrot.slane %v36, %v40
  %vm43 = vcmask 64512
  %v45 = vsel %vm43, %v34, 0
  %vm47 = vcmask 1043456
  %v49 = vsel %vm47, %v35, 0
  %51 = vmatprep.subr.bf16.mxu0 0
  %52 = vmatpush1.bf16.msra.mxu0 %v49
  %53 = vmatprep.subr.bf16.mxu0 0
  %54 = vmatpush1.bf16.msra.mxu0 0
  %55 = vmatprep.subr.bf16.mxu0 0
  %56 = vmatpush1.bf16.msra.mxu0 0
  %57 = vmatprep.subr.bf16.mxu0 0
  %58 = vmatpush1.bf16.msra.mxu0 0
  %59 = vmatprep.subr.bf16.mxu0 0
  %60 = vmatpush1.bf16.msra.mxu0 0
  %61 = vmatprep.subr.bf16.mxu0 0
  %62 = vmatpush1.bf16.msra.mxu0 0
  %63 = vmatprep.subr.bf16.mxu0 0
  %64 = vmatpush1.bf16.msra.mxu0 0
  %65 = vmatprep.subr.bf16.mxu0 0
  %66 = vmatpush1.bf16.msra.mxu0 0
  %67 = vmatprep.subr.bf16.mxu0 0
  %68 = vmatpush1.bf16.msra.mxu0 0
  %69 = vmatprep.subr.bf16.mxu0 0
  %70 = vmatpush1.bf16.msra.mxu0 0
  %71 = vmatprep.subr.bf16.mxu0 0
  %72 = vmatpush1.bf16.msra.mxu0 0
  %73 = vmatprep.subr.bf16.mxu0 0
  %74 = vmatpush1.bf16.msra.mxu0 0
  %75 = vmatprep.subr.bf16.mxu0 0
  %76 = vmatpush1.bf16.msra.mxu0 0
  %77 = vmatprep.subr.bf16.mxu0 0
  %78 = vmatpush1.bf16.msra.mxu0 0
  %79 = vmatprep.subr.bf16.mxu0 0
  %80 = vmatpush1.bf16.msra.mxu0 0
  %81 = vmatprep.subr.bf16.mxu0 0
  %82 = vmatpush1.bf16.msra.mxu0 0
  %83 = vmatprep.mubr.bf16.mxu0 0
  %84 = vmatmul.mubr.bf16.gmra.mrb[0].mxu0 %v45
  %v85 = vpop.f32.mrb[0].mxu0
  %v86 = vadd.f32 %v41, %v85
  %v87 = vpop.f32.mrb[0].mxu0
  %v88 = vpop.f32.mrb[0].mxu0
  %v89 = vpop.f32.mrb[0].mxu0
  %90 = vdwg.mxu0
  %v91 = vmax.f32 %v86, 0.0
  %v92 = vpack.c.bf16 %v91, %v91
  %v93 = vld [vmem:[%s3] sm:$0xf]
  %v94 = vld [vmem:[%s3 + $0x4] sm:$0xf]
  %v95 = vld [vmem:[%s3 + $0x8] sm:$0xf]
  %v96 = vld [vmem:[%s3 + $0xc] sm:$0xf]
  %v97 = vld [vmem:[%s3 + $0x10] sm:$0xf]
  %v98 = vld [vmem:[%s3 + $0x14] sm:$0xf]
  %v99 = vld [vmem:[%s3 + $0x18] sm:$0xf]
  %v100 = vld [vmem:[%s3 + $0x1c] sm:$0xf]
  %v101 = vld [vmem:[%s3 + $0x20] sm:$0xf]
  %v102 = vld [vmem:[%s3 + $0x24] sm:$0xf]
  %v103 = vld [vmem:[%s3 + $0x28] sm:$0xf]
  %v104 = vld [vmem:[%s3 + $0x2c] sm:$0xf]
  %v105 = vld [vmem:[%s3 + $0x30] sm:$0xf]
  %v106 = vld [vmem:[%s3 + $0x34] sm:$0xf]
  %v107 = vld [vmem:[%s3 + $0x38] sm:$0xf]
  %v108 = vld [vmem:[%s3 + $0x3c] sm:$0xf]
  %v109 = vld [vmem:[%s4] sm:$0x1]
  %v111 = vlaneseq
  %v112 = vshrl.u32 %v111, 7
  %v113 = vsub.s32 0, %v112
  %v114 = vrot.slane %v109, %v113
  %v132 = vunpack.c.l.b16 %v93
  %v133 = vunpack.c.l.b16 %v94
  %v134 = vunpack.c.l.b16 %v95
  %v135 = vunpack.c.l.b16 %v96
  %v136 = vunpack.c.l.b16 %v97
  %v137 = vunpack.c.l.b16 %v98
  %v138 = vunpack.c.l.b16 %v99
  %v139 = vunpack.c.l.b16 %v100
  %v140 = vunpack.c.l.b16 %v101
  %v141 = vunpack.c.l.b16 %v102
  %v142 = vunpack.c.l.b16 %v103
  %v143 = vunpack.c.l.b16 %v104
  %v144 = vunpack.c.l.b16 %v105
  %v145 = vunpack.c.l.b16 %v106
  %v146 = vunpack.c.l.b16 %v107
  %v147 = vunpack.c.l.b16 %v108
  %v148 = vpack.c.b16 %v133, %v132
  %v149 = vpack.c.b16 %v135, %v134
  %v150 = vpack.c.b16 %v137, %v136
  %v151 = vpack.c.b16 %v139, %v138
  %v152 = vpack.c.b16 %v141, %v140
  %v153 = vpack.c.b16 %v143, %v142
  %v154 = vpack.c.b16 %v145, %v144
  %v155 = vpack.c.b16 %v147, %v146
  %164 = vmatprep.subr.bf16.mxu0 0
  %165 = vmatpush1.bf16.msra.mxu0 %v148
  %166 = vmatprep.subr.bf16.mxu0 0
  %167 = vmatpush1.bf16.msra.mxu0 %v149
  %168 = vmatprep.subr.bf16.mxu0 0
  %169 = vmatpush1.bf16.msra.mxu0 %v150
  %170 = vmatprep.subr.bf16.mxu0 0
  %171 = vmatpush1.bf16.msra.mxu0 %v151
  %172 = vmatprep.subr.bf16.mxu0 0
  %173 = vmatpush1.bf16.msra.mxu0 %v152
  %174 = vmatprep.subr.bf16.mxu0 0
  %175 = vmatpush1.bf16.msra.mxu0 %v153
  %176 = vmatprep.subr.bf16.mxu0 0
  %177 = vmatpush1.bf16.msra.mxu0 %v154
  %178 = vmatprep.subr.bf16.mxu0 0
  %179 = vmatpush1.bf16.msra.mxu0 %v155
  %180 = vmatprep.subr.bf16.mxu0 0
  %181 = vmatpush1.bf16.msra.mxu0 0
  %182 = vmatprep.subr.bf16.mxu0 0
  %183 = vmatpush1.bf16.msra.mxu0 0
  %184 = vmatprep.subr.bf16.mxu0 0
  %185 = vmatpush1.bf16.msra.mxu0 0
  %186 = vmatprep.subr.bf16.mxu0 0
  %187 = vmatpush1.bf16.msra.mxu0 0
  %188 = vmatprep.subr.bf16.mxu0 0
  %189 = vmatpush1.bf16.msra.mxu0 0
  %190 = vmatprep.subr.bf16.mxu0 0
  %191 = vmatpush1.bf16.msra.mxu0 0
  %192 = vmatprep.subr.bf16.mxu0 0
  %193 = vmatpush1.bf16.msra.mxu0 0
  %194 = vmatprep.subr.bf16.mxu0 0
  %195 = vmatpush1.bf16.msra.mxu0 0
  %196 = vmatprep.mubr.bf16.mxu0 0
  %197 = vmatmul.mubr.bf16.gmra.mrb[0].mxu0 %v92
  %v198 = vpop.f32.mrb[0].mxu0
  %v199 = vadd.f32 %v114, %v198
  %v200 = vpop.f32.mrb[0].mxu0
  %v201 = vpop.f32.mrb[0].mxu0
  %v202 = vpop.f32.mrb[0].mxu0
  %203 = vdwg.mxu0
  %v204 = vmax.f32 %v199, 0.0
  %v205 = vpack.c.bf16 %v204, %v204
  %v206 = vld [vmem:[%s5] sm:$0xf]
  %v207 = vld [vmem:[%s5 + $0x4] sm:$0xf]
  %v208 = vld [vmem:[%s5 + $0x8] sm:$0xf]
  %v209 = vld [vmem:[%s5 + $0xc] sm:$0xf]
  %v210 = vld [vmem:[%s5 + $0x10] sm:$0xf]
  %v211 = vld [vmem:[%s5 + $0x14] sm:$0xf]
  %v212 = vld [vmem:[%s5 + $0x18] sm:$0xf]
  %v213 = vld [vmem:[%s5 + $0x1c] sm:$0xf]
  %v214 = vld [vmem:[%s5 + $0x20] sm:$0xf]
  %v215 = vld [vmem:[%s5 + $0x24] sm:$0xf]
  %v216 = vld [vmem:[%s5 + $0x28] sm:$0xf]
  %v217 = vld [vmem:[%s5 + $0x2c] sm:$0xf]
  %v218 = vld [vmem:[%s5 + $0x30] sm:$0xf]
  %v219 = vld [vmem:[%s5 + $0x34] sm:$0xf]
  %v220 = vld [vmem:[%s5 + $0x38] sm:$0xf]
  %v221 = vld [vmem:[%s5 + $0x3c] sm:$0xf]
  %v222 = vld [vmem:[%s6] sm:$0x1]
  %v224 = vlaneseq
  %v225 = vshrl.u32 %v224, 7
  %v226 = vsub.s32 0, %v225
  %v227 = vrot.slane %v222, %v226
  %v245 = vunpack.c.l.b16 %v206
  %v246 = vunpack.c.l.b16 %v207
  %v247 = vunpack.c.l.b16 %v208
  %v248 = vunpack.c.l.b16 %v209
  %v249 = vunpack.c.l.b16 %v210
  %v250 = vunpack.c.l.b16 %v211
  %v251 = vunpack.c.l.b16 %v212
  %v252 = vunpack.c.l.b16 %v213
  %v253 = vunpack.c.l.b16 %v214
  %v254 = vunpack.c.l.b16 %v215
  %v255 = vunpack.c.l.b16 %v216
  %v256 = vunpack.c.l.b16 %v217
  %v257 = vunpack.c.l.b16 %v218
  %v258 = vunpack.c.l.b16 %v219
  %v259 = vunpack.c.l.b16 %v220
  %v260 = vunpack.c.l.b16 %v221
  %v261 = vpack.c.b16 %v246, %v245
  %v262 = vpack.c.b16 %v248, %v247
  %v263 = vpack.c.b16 %v250, %v249
  %v264 = vpack.c.b16 %v252, %v251
  %v265 = vpack.c.b16 %v254, %v253
  %v266 = vpack.c.b16 %v256, %v255
  %v267 = vpack.c.b16 %v258, %v257
  %v268 = vpack.c.b16 %v260, %v259
  %277 = vmatprep.subr.bf16.mxu0 0
  %278 = vmatpush1.bf16.msra.mxu0 %v261
  %279 = vmatprep.subr.bf16.mxu0 0
  %280 = vmatpush1.bf16.msra.mxu0 %v262
  %281 = vmatprep.subr.bf16.mxu0 0
  %282 = vmatpush1.bf16.msra.mxu0 %v263
  %283 = vmatprep.subr.bf16.mxu0 0
  %284 = vmatpush1.bf16.msra.mxu0 %v264
  %285 = vmatprep.subr.bf16.mxu0 0
  %286 = vmatpush1.bf16.msra.mxu0 %v265
  %287 = vmatprep.subr.bf16.mxu0 0
  %288 = vmatpush1.bf16.msra.mxu0 %v266
  %289 = vmatprep.subr.bf16.mxu0 0
  %290 = vmatpush1.bf16.msra.mxu0 %v267
  %291 = vmatprep.subr.bf16.mxu0 0
  %292 = vmatpush1.bf16.msra.mxu0 %v268
  %293 = vmatprep.subr.bf16.mxu0 0
  %294 = vmatpush1.bf16.msra.mxu0 0
  %295 = vmatprep.subr.bf16.mxu0 0
  %296 = vmatpush1.bf16.msra.mxu0 0
  %297 = vmatprep.subr.bf16.mxu0 0
  %298 = vmatpush1.bf16.msra.mxu0 0
  %299 = vmatprep.subr.bf16.mxu0 0
  %300 = vmatpush1.bf16.msra.mxu0 0
  %301 = vmatprep.subr.bf16.mxu0 0
  %302 = vmatpush1.bf16.msra.mxu0 0
  %303 = vmatprep.subr.bf16.mxu0 0
  %304 = vmatpush1.bf16.msra.mxu0 0
  %305 = vmatprep.subr.bf16.mxu0 0
  %306 = vmatpush1.bf16.msra.mxu0 0
  %307 = vmatprep.subr.bf16.mxu0 0
  %308 = vmatpush1.bf16.msra.mxu0 0
  %309 = vmatprep.mubr.bf16.mxu0 0
  %310 = vmatmul.mubr.bf16.gmra.mrb[0].mxu0 %v205
  %v311 = vpop.f32.mrb[0].mxu0
  %v312 = vadd.f32 %v227, %v311
  %v313 = vpop.f32.mrb[0].mxu0
  %v314 = vpop.f32.mrb[0].mxu0
  %v315 = vpop.f32.mrb[0].mxu0
  %316 = vdwg.mxu0
  %v317 = vmax.f32 %v312, 0.0
  %v318 = vpack.c.bf16 %v317, %v317
  %v319 = vld [vmem:[%s7] sm:$0xf]
  %v320 = vld [vmem:[%s7 + $0x4] sm:$0xf]
  %v321 = vld [vmem:[%s7 + $0x8] sm:$0xf]
  %v322 = vld [vmem:[%s7 + $0xc] sm:$0xf]
  %v323 = vld [vmem:[%s7 + $0x10] sm:$0xf]
  %v324 = vld [vmem:[%s7 + $0x14] sm:$0xf]
  %v325 = vld [vmem:[%s7 + $0x18] sm:$0xf]
  %v326 = vld [vmem:[%s7 + $0x1c] sm:$0xf]
  %v327 = vld [vmem:[%s8] sm:$0x1]
  %v329 = vlaneseq
  %v330 = vshrl.u32 %v329, 7
  %v331 = vsub.s32 0, %v330
  %v332 = vrot.slane %v327, %v331
  %v342 = vunpack.c.l.b16 %v319
  %v343 = vunpack.c.l.b16 %v320
  %v344 = vunpack.c.l.b16 %v321
  %v345 = vunpack.c.l.b16 %v322
  %v346 = vunpack.c.l.b16 %v323
  %v347 = vunpack.c.l.b16 %v324
  %v348 = vunpack.c.l.b16 %v325
  %v349 = vunpack.c.l.b16 %v326
  %v350 = vpack.c.b16 %v343, %v342
  %v351 = vpack.c.b16 %v345, %v344
  %v352 = vpack.c.b16 %v347, %v346
  %v353 = vpack.c.b16 %v349, %v348
  %vm358 = vcmask 523264
  %v360 = vsel %vm358, %v318, 0
  %362 = vmatprep.subr.bf16.mxu0 0
  %363 = vmatpush1.bf16.msra.mxu0 %v350
  %364 = vmatprep.subr.bf16.mxu0 0
  %365 = vmatpush1.bf16.msra.mxu0 %v351
  %366 = vmatprep.subr.bf16.mxu0 0
  %367 = vmatpush1.bf16.msra.mxu0 %v352
  %368 = vmatprep.subr.bf16.mxu0 0
  %369 = vmatpush1.bf16.msra.mxu0 %v353
  %370 = vmatprep.subr.bf16.mxu0 0
  %371 = vmatpush1.bf16.msra.mxu0 0
  %372 = vmatprep.subr.bf16.mxu0 0
  %373 = vmatpush1.bf16.msra.mxu0 0
  %374 = vmatprep.subr.bf16.mxu0 0
  %375 = vmatpush1.bf16.msra.mxu0 0
  %376 = vmatprep.subr.bf16.mxu0 0
  %377 = vmatpush1.bf16.msra.mxu0 0
  %378 = vmatprep.subr.bf16.mxu0 0
  %379 = vmatpush1.bf16.msra.mxu0 0
  %380 = vmatprep.subr.bf16.mxu0 0
  %381 = vmatpush1.bf16.msra.mxu0 0
  %382 = vmatprep.subr.bf16.mxu0 0
  %383 = vmatpush1.bf16.msra.mxu0 0
  %384 = vmatprep.subr.bf16.mxu0 0
  %385 = vmatpush1.bf16.msra.mxu0 0
  %386 = vmatprep.subr.bf16.mxu0 0
  %387 = vmatpush1.bf16.msra.mxu0 0
  %388 = vmatprep.subr.bf16.mxu0 0
  %389 = vmatpush1.bf16.msra.mxu0 0
  %390 = vmatprep.subr.bf16.mxu0 0
  %391 = vmatpush1.bf16.msra.mxu0 0
  %392 = vmatprep.subr.bf16.mxu0 0
  %393 = vmatpush1.bf16.msra.mxu0 0
  %394 = vmatprep.mubr.bf16.mxu0 0
  %395 = vmatmul.mubr.bf16.gmra.mrb[0].mxu0 %v360
  %v396 = vpop.f32.mrb[0].mxu0
  %v397 = vadd.f32 %v332, %v396
  %v398 = vpop.f32.mrb[0].mxu0
  %v399 = vpop.f32.mrb[0].mxu0
  %v400 = vpop.f32.mrb[0].mxu0
  %401 = vdwg.mxu0
  %v402 = vsub.f32 0.0, %v397
  %v403 = vmul.f32 %v402, 1.442695
  %v404 = vpow.pop %v403
  %v405 = vadd.f32 %v404, 1.0
  %v406 = vrcp.pop %v405
  %vm407 = vcmask 25600
  %408 = vst.msk [vmem:[%s9] sm:$0x3] %vm407, %v406
  // Predicated region
  $region38: #{discriminator_forward.1} parent=0 // pred_check
    _
  $region39: #{discriminator_forward.1} parent=0 // pred_check_branch
    %410 = sbr.rel (0) target = $region41
  $region40: #{discriminator_forward.1} parent=0 // pred_region
    _
  $region41: #{discriminator_forward.1} parent=0 // pred_fallthru
    _
  // Predicated region
  $region42: #{discriminator_forward.1} parent=0 // pred_check
    _
  $region43: #{discriminator_forward.1} parent=0 // pred_check_branch
    %412 = sbr.rel (0) target = $region45
  $region44: #{discriminator_forward.1} parent=0 // pred_region
    _
  $region45: #{discriminator_forward.1} parent=0 // pred_fallthru
    _

</llo_original>
